<compile_context>
chip_gen: v6e
topology: v6e:2x2x1
jax: 0.10.0
libtpu: 0.0.40
codegen_flags: <defaults>
</compile_context>

<pallas_src>
import functools

import jax
import jax.numpy as jnp
from jax import lax
from jax.experimental import pallas as pl
from jax.experimental.pallas import tpu as pltpu


# ---------------------------------------------------------------------------
# Kernels
# ---------------------------------------------------------------------------
def _bn_stats_kernel(x_ref, mean_ref, var_ref, s_ref, sum_ref, ssq_ref,
                     *, t_len, t_tile, first_count, inv_n):
    """Single pass over x: per-channel biased mean/var via shifted accumulation.

    x_ref    : (Bb, C, t_tile) activation tile (T on the lane axis)
    mean_ref : (1, C, 1) f32 output (written on the last grid step)
    var_ref  : (1, C, 1) f32 output (written on the last grid step)
    s_ref    : (1, C, 1) f32 scratch  per-channel shift (~mean of first block)
    sum_ref  : (1, C, 1) f32 scratch  sum(x - s)
    ssq_ref  : (1, C, 1) f32 scratch  sum((x - s)^2)
    """
    bi = pl.program_id(0)
    ti = pl.program_id(1)
    x = x_ref[...].astype(jnp.float32)

    # Mask lanes beyond T for the (possibly partial) last T-tile; Pallas-padded
    # lanes contain unspecified data and must not enter the reduction.
    lane = lax.broadcasted_iota(jnp.int32, x.shape, 2)
    valid = lane < (t_len - ti * t_tile)

    @pl.when(jnp.logical_and(bi == 0, ti == 0))
    def _():
        xm = jnp.where(valid, x, 0.0)
        # Per-channel shift ~= mean of the first block: keeps the one-pass
        # shifted-sum-of-squares variance numerically close to the two-pass form.
        s_ref[...] = jnp.sum(xm, axis=(0, 2), keepdims=True) * (1.0 / first_count)
        sum_ref[...] = jnp.zeros_like(sum_ref)
        ssq_ref[...] = jnp.zeros_like(ssq_ref)

    xd = jnp.where(valid, x - s_ref[...], 0.0)
    sum_ref[...] += jnp.sum(xd, axis=(0, 2), keepdims=True)
    ssq_ref[...] += jnp.sum(xd * xd, axis=(0, 2), keepdims=True)

    @pl.when(jnp.logical_and(bi == pl.num_programs(0) - 1,
                             ti == pl.num_programs(1) - 1))
    def _():
        m_d = sum_ref[...] * inv_n                       # E[x - s]
        mean_ref[...] = s_ref[...] + m_d
        var_ref[...] = jnp.maximum(ssq_ref[...] * inv_n - m_d * m_d, 0.0)


def _film_affine_kernel(x_ref, scale_ref, shift_ref, o_ref):
    """out = x * scale + shift  (per-(batch, channel) affine, lane-broadcast over T).

    x_ref     : (Bb, C, t_tile)
    scale_ref : (Bb, C, 1)   g * rsqrt(var + eps)
    shift_ref : (Bb, C, 1)   b - mean * scale
    o_ref     : (Bb, C, t_tile)
    """
    x = x_ref[...].astype(jnp.float32)
    o_ref[...] = (x * scale_ref[...] + shift_ref[...]).astype(o_ref.dtype)


# ---------------------------------------------------------------------------
# Generation-aware tiling
# ---------------------------------------------------------------------------
def _vmem_caps():
    """Returns (per-block byte budget, vmem_limit_bytes) for the current TPU generation."""
    try:
        phys = int(pltpu.get_tpu_info().vmem_capacity_bytes)
    except Exception:
        phys = 64 << 20  # conservative fallback (v7x per-TC VMEM)
    # Scoped limit: half of physical, capped at 48 MiB (=> ~32 MiB on v7x, 48 MiB v5e/v6e).
    vmem_limit = int(min(phys // 2, 48 << 20))
    # Double-buffered in + out ~= 4x block bytes; keep that under ~60% of the scoped limit.
    block_budget = (vmem_limit * 6 // 10) // 4
    return block_budget, vmem_limit


def _pick_tiles(B, C, T, itemsize, block_budget):
    """Pick (b_tile, t_tile): lane-dense blocks sized by bytes toward the VMEM budget."""
    bytes_per_lane = max(1, C * itemsize)
    budget_lanes = max(1, block_budget // bytes_per_lane)
    if T <= budget_lanes:
        # Whole time axis fits in one block: fold batch items up to the byte budget
        # (largest divisor of B so the grid stays exact).
        max_b = max(1, block_budget // (bytes_per_lane * T))
        b_tile = max(d for d in range(1, B + 1) if B % d == 0 and d <= max_b)
        return b_tile, T
    if T < 128:
        # TODO(synk): sub-128 last dim => masked partial stores; if short-T workloads
        # matter, fold (C, T) into a lane-dense last axis in the wrapper instead.
        return 1, T
    t_tile = max(128, (budget_lanes // 128) * 128)
    t_tile = min(t_tile, ((T + 127) // 128) * 128)
    return 1, t_tile


# ---------------------------------------------------------------------------
# Forward
# ---------------------------------------------------------------------------
@functools.partial(jax.jit, static_argnames=("batch_norm", "eps", "block_budget_bytes"))
def film_forward(x, cond, weight, bias, *, batch_norm=True, eps=1e-5,
                 block_budget_bytes=None):
    """FiLM forward.

    x      : (B, C, T)   activations, PyTorch Conv1d (NCW) layout
    cond   : (B, Tc, D)  conditioning (Tc == 1: one conditioning vector per item)
    weight : (2C, D)     nn.Linear(cond_dim, 2*C) weight
    bias   : (2C,)       nn.Linear bias
    """
    B, C, T = x.shape
    Bc, Tc, D = cond.shape
    assert Bc == B
    # TODO(synk): Tc == T (per-timestep conditioning) would need g/b tiled like x.
    assert Tc == 1, "kernel supports one conditioning vector per batch item (Tc == 1)"

    f32 = jnp.float32
    # --- adaptor: Linear(D -> 2C); trivially small, hoisted out of the kernels ---
    gb = jnp.einsum("btd,od->bto", cond.astype(f32), weight.astype(f32)) + bias.astype(f32)
    g = gb[:, 0, :C].reshape(B, C, 1)            # == g.permute(0, 2, 1), Tc == 1
    b = gb[:, 0, C:].reshape(B, C, 1)

    # --- generation-aware, byte-targeted tiling shared by both kernels ---
    auto_budget, vmem_limit = _vmem_caps()
    budget = auto_budget if block_budget_bytes is None else int(block_budget_bytes)
    b_tile, t_tile = _pick_tiles(B, C, T, jnp.dtype(x.dtype).itemsize, budget)
    grid = (B // b_tile, pl.cdiv(T, t_tile))
    x_spec = pl.BlockSpec((b_tile, C, t_tile), lambda bi, ti: (bi, 0, ti))

    if batch_norm:
        # --- BatchNorm1d(C, affine=False) training-mode biased stats: ONE pass over x ---
        mean, var = pl.pallas_call(
            functools.partial(
                _bn_stats_kernel,
                t_len=T, t_tile=t_tile,
                first_count=float(min(T, t_tile) * b_tile),
                inv_n=1.0 / float(B * T)),
            out_shape=(jax.ShapeDtypeStruct((1, C, 1), f32),
                       jax.ShapeDtypeStruct((1, C, 1), f32)),
            grid=grid,
            in_specs=[x_spec],
            out_specs=(pl.BlockSpec((1, C, 1), lambda bi, ti: (0, 0, 0)),
                       pl.BlockSpec((1, C, 1), lambda bi, ti: (0, 0, 0))),
            scratch_shapes=[pltpu.VMEM((1, C, 1), f32),
                            pltpu.VMEM((1, C, 1), f32),
                            pltpu.VMEM((1, C, 1), f32)],
            compiler_params=pltpu.CompilerParams(
                dimension_semantics=("arbitrary", "arbitrary"),
                vmem_limit_bytes=vmem_limit),
        )(x)
        inv_std = lax.rsqrt(var + eps)            # (1, C, 1)
        scale = g * inv_std                       # (B, C, 1)
        shift = b - mean * scale                  # (B, C, 1)
    else:
        scale, shift = g, b

    # --- tiled, pipelined, lane-dense FMA over (B-tiles, T-tiles) ---
    return pl.pallas_call(
        _film_affine_kernel,
        out_shape=jax.ShapeDtypeStruct((B, C, T), x.dtype),
        grid=grid,
        in_specs=[
            x_spec,
            pl.BlockSpec((b_tile, C, 1), lambda bi, ti: (bi, 0, 0)),  # VMEM-resident over T
            pl.BlockSpec((b_tile, C, 1), lambda bi, ti: (bi, 0, 0)),
        ],
        out_specs=pl.BlockSpec((b_tile, C, t_tile), lambda bi, ti: (bi, 0, ti)),
        compiler_params=pltpu.CompilerParams(
            dimension_semantics=("parallel", "parallel"),    # megacore sharding on v7x
            vmem_limit_bytes=vmem_limit),
    )(x, scale, shift)


def film_reference(x, cond, weight, bias, *, batch_norm=True, eps=1e-5):
    """Pure-JAX reference mirroring the PyTorch forward (training-mode BN, two-pass stats)."""
    gb = jnp.einsum("btd,od->bto", cond, weight) + bias          # (B, Tc, 2C)
    C = x.shape[1]
    g = jnp.transpose(gb[..., :C], (0, 2, 1))                    # (B, C, Tc)
    b = jnp.transpose(gb[..., C:], (0, 2, 1))
    if batch_norm:
        mean = jnp.mean(x, axis=(0, 2), keepdims=True)
        var = jnp.mean(jnp.square(x - mean), axis=(0, 2), keepdims=True)
        x = (x - mean) * lax.rsqrt(var + eps)
    return x * g + b


if __name__ == "__main__":
    # Small, deterministic example consistent with FiLM usage in a 1D TCN.
    B, C, T = 2, 16, 48        # batch, num_features, time
    cond_dim, Tc = 8, 1        # conditioning dim, one conditioning vector per item

    key = jax.random.PRNGKey(0)
    kx, kc, kw, kb = jax.random.split(key, 4)

    x = jax.random.normal(kx, (B, C, T), dtype=jnp.float32)
    cond = jax.random.normal(kc, (B, Tc, cond_dim), dtype=jnp.float32)

    # Deterministic adaptor params (nn.Linear(cond_dim, 2*C)): weight (2C, D), bias (2C,)
    bound = 1.0 / (cond_dim ** 0.5)
    weight = jax.random.uniform(kw, (2 * C, cond_dim), jnp.float32, -bound, bound)
    bias = jax.random.uniform(kb, (2 * C,), jnp.float32, -bound, bound)

    out = jax.block_until_ready(film_forward(x, cond, weight, bias))
    ref = film_reference(x, cond, weight, bias)
    assert out.shape == (B, C, T)
    assert jnp.allclose(out, ref, rtol=1e-4, atol=1e-4), "mismatch vs reference"

    # Exercise the multi-tile path (partial last T-tile + multi-step stats accumulation)
    # with a tiny forced block budget, still at small shapes.
    T2 = 320
    x2 = jax.random.normal(kx, (B, C, T2), dtype=jnp.float32)
    out2 = jax.block_until_ready(
        film_forward(x2, cond, weight, bias, block_budget_bytes=8192))
    ref2 = film_reference(x2, cond, weight, bias)
    assert jnp.allclose(out2, ref2, rtol=1e-4, atol=1e-4), "mismatch vs reference (tiled)"

    # batch_norm=False path (module option).
    out3 = jax.block_until_ready(film_forward(x, cond, weight, bias, batch_norm=False))
    ref3 = film_reference(x, cond, weight, bias, batch_norm=False)
    assert jnp.allclose(out3, ref3, rtol=1e-4, atol=1e-4), "mismatch vs reference (no BN)"

    print("KERNEL_OK")
</pallas_src>

<mosaic_0001>
module attributes {stable_mosaic.version = 11 : i64} {
  func.func @_bn_stats_kernel(%arg0: i32, %arg1: i32, %arg2: memref<2x16x48xf32, #tpu.memory_space<vmem>>, %arg3: memref<1x16x1xf32, #tpu.memory_space<vmem>>, %arg4: memref<1x16x1xf32, #tpu.memory_space<vmem>>, %arg5: memref<1x16x1xf32, #tpu.memory_space<vmem>>, %arg6: memref<1x16x1xf32, #tpu.memory_space<vmem>>, %arg7: memref<1x16x1xf32, #tpu.memory_space<vmem>>) attributes {dimension_semantics = [#tpu.dimension_semantics<arbitrary>, #tpu.dimension_semantics<arbitrary>], iteration_bounds = array<i64: 1, 1>, scalar_prefetch = 0 : i64, scratch_operands = 3 : i64, tpu.core_type = #tpu.core_type<tc>, window_params = [{transform_indices = @transform_0, window_bounds = array<i64: 2, 16, 48>}, {pipeline_mode = #tpu.pipeline_mode<synchronous>, transform_indices = @transform_1, window_bounds = array<i64: 1, 16, 1>}, {pipeline_mode = #tpu.pipeline_mode<synchronous>, transform_indices = @transform_2, window_bounds = array<i64: 1, 16, 1>}]} {
    %c0 = arith.constant 0 : index
    %c0_0 = arith.constant 0 : index
    %c0_1 = arith.constant 0 : index
    %0 = vector.load %arg2[%c0, %c0_0, %c0_1] : memref<2x16x48xf32, #tpu.memory_space<vmem>>, vector<2x16x48xf32>
    %1 = tpu.iota {dimensions = array<i32: 2>} : vector<2x16x48xi32>
    %c48_i32 = arith.constant 48 : i32
    %2 = arith.muli %arg1, %c48_i32 : i32
    %c48_i32_2 = arith.constant 48 : i32
    %3 = arith.subi %c48_i32_2, %2 : i32
    %4 = vector.broadcast %3 : i32 to vector<2x16x48xi32>
    %5 = arith.cmpi slt, %1, %4 : vector<2x16x48xi32>
    %c0_i32 = arith.constant 0 : i32
    %6 = arith.cmpi eq, %arg0, %c0_i32 : i32
    %c0_i32_3 = arith.constant 0 : i32
    %7 = arith.cmpi eq, %arg1, %c0_i32_3 : i32
    %8 = arith.andi %6, %7 : i1
    %9 = arith.extui %8 : i1 to i32
    %c0_i32_4 = arith.constant 0 : i32
    %10 = arith.cmpi ne, %9, %c0_i32_4 : i32
    scf.if %10 {
      %cst_25 = arith.constant 0.000000e+00 : f32
      %32 = vector.broadcast %cst_25 : f32 to vector<2x16x48xf32>
      %33 = arith.select %5, %0, %32 : vector<2x16x48xi1>, vector<2x16x48xf32>
      %cst_26 = arith.constant dense<0.000000e+00> : vector<16xf32>
      %34 = vector.multi_reduction <add>, %33, %cst_26 [0, 2] : vector<2x16x48xf32> to vector<16xf32>
      %35 = vector.shape_cast %34 : vector<16xf32> to vector<1x16x1xf32>
      %cst_27 = arith.constant 0.010416667 : f32
      %36 = vector.broadcast %cst_27 : f32 to vector<1x16x1xf32>
      %37 = arith.mulf %35, %36 : vector<1x16x1xf32>
      %c0_28 = arith.constant 0 : index
      %c0_29 = arith.constant 0 : index
      %c0_30 = arith.constant 0 : index
      %38 = vector.load %arg5[%c0_28, %c0_29, %c0_30] : memref<1x16x1xf32, #tpu.memory_space<vmem>>, vector<1x16x1xf32>
      tpu.vector_store %arg5[%c0_28, %c0_29, %c0_30], %37 {strides = array<i32>} : memref<1x16x1xf32, #tpu.memory_space<vmem>>, vector<1x16x1xf32>,
      %cst_31 = arith.constant 0.000000e+00 : f32
      %39 = vector.broadcast %cst_31 : f32 to vector<1x16x1xf32>
      %c0_32 = arith.constant 0 : index
      %c0_33 = arith.constant 0 : index
      %c0_34 = arith.constant 0 : index
      %40 = vector.load %arg6[%c0_32, %c0_33, %c0_34] : memref<1x16x1xf32, #tpu.memory_space<vmem>>, vector<1x16x1xf32>
      tpu.vector_store %arg6[%c0_32, %c0_33, %c0_34], %39 {strides = array<i32>} : memref<1x16x1xf32, #tpu.memory_space<vmem>>, vector<1x16x1xf32>,
      %cst_35 = arith.constant 0.000000e+00 : f32
      %41 = vector.broadcast %cst_35 : f32 to vector<1x16x1xf32>
      %c0_36 = arith.constant 0 : index
      %c0_37 = arith.constant 0 : index
      %c0_38 = arith.constant 0 : index
      %42 = vector.load %arg7[%c0_36, %c0_37, %c0_38] : memref<1x16x1xf32, #tpu.memory_space<vmem>>, vector<1x16x1xf32>
      tpu.vector_store %arg7[%c0_36, %c0_37, %c0_38], %41 {strides = array<i32>} : memref<1x16x1xf32, #tpu.memory_space<vmem>>, vector<1x16x1xf32>,
    } else {
    }
    %c0_5 = arith.constant 0 : index
    %c0_6 = arith.constant 0 : index
    %c0_7 = arith.constant 0 : index
    %11 = vector.load %arg5[%c0_5, %c0_6, %c0_7] : memref<1x16x1xf32, #tpu.memory_space<vmem>>, vector<1x16x1xf32>
    %12 = vector.broadcast %11 : vector<1x16x1xf32> to vector<2x16x48xf32>
    %13 = arith.subf %0, %12 : vector<2x16x48xf32>
    %cst = arith.constant 0.000000e+00 : f32
    %14 = vector.broadcast %cst : f32 to vector<2x16x48xf32>
    %15 = arith.select %5, %13, %14 : vector<2x16x48xi1>, vector<2x16x48xf32>
    %c0_8 = arith.constant 0 : index
    %c0_9 = arith.constant 0 : index
    %c0_10 = arith.constant 0 : index
    %16 = vector.load %arg6[%c0_8, %c0_9, %c0_10] : memref<1x16x1xf32, #tpu.memory_space<vmem>>, vector<1x16x1xf32>
    %cst_11 = arith.constant dense<0.000000e+00> : vector<16xf32>
    %17 = vector.multi_reduction <add>, %15, %cst_11 [0, 2] : vector<2x16x48xf32> to vector<16xf32>
    %18 = vector.shape_cast %17 : vector<16xf32> to vector<1x16x1xf32>
    %19 = arith.addf %16, %18 : vector<1x16x1xf32>
    %c0_12 = arith.constant 0 : index
    %c0_13 = arith.constant 0 : index
    %c0_14 = arith.constant 0 : index
    %20 = vector.load %arg6[%c0_12, %c0_13, %c0_14] : memref<1x16x1xf32, #tpu.memory_space<vmem>>, vector<1x16x1xf32>
    tpu.vector_store %arg6[%c0_12, %c0_13, %c0_14], %19 {strides = array<i32>} : memref<1x16x1xf32, #tpu.memory_space<vmem>>, vector<1x16x1xf32>,
    %c0_15 = arith.constant 0 : index
    %c0_16 = arith.constant 0 : index
    %c0_17 = arith.constant 0 : index
    %21 = vector.load %arg7[%c0_15, %c0_16, %c0_17] : memref<1x16x1xf32, #tpu.memory_space<vmem>>, vector<1x16x1xf32>
    %22 = arith.mulf %15, %15 : vector<2x16x48xf32>
    %cst_18 = arith.constant dense<0.000000e+00> : vector<16xf32>
    %23 = vector.multi_reduction <add>, %22, %cst_18 [0, 2] : vector<2x16x48xf32> to vector<16xf32>
    %24 = vector.shape_cast %23 : vector<16xf32> to vector<1x16x1xf32>
    %25 = arith.addf %21, %24 : vector<1x16x1xf32>
    %c0_19 = arith.constant 0 : index
    %c0_20 = arith.constant 0 : index
    %c0_21 = arith.constant 0 : index
    %26 = vector.load %arg7[%c0_19, %c0_20, %c0_21] : memref<1x16x1xf32, #tpu.memory_space<vmem>>, vector<1x16x1xf32>
    tpu.vector_store %arg7[%c0_19, %c0_20, %c0_21], %25 {strides = array<i32>} : memref<1x16x1xf32, #tpu.memory_space<vmem>>, vector<1x16x1xf32>,
    %c0_i32_22 = arith.constant 0 : i32
    %27 = arith.cmpi eq, %arg0, %c0_i32_22 : i32
    %c0_i32_23 = arith.constant 0 : i32
    %28 = arith.cmpi eq, %arg1, %c0_i32_23 : i32
    %29 = arith.andi %27, %28 : i1
    %30 = arith.extui %29 : i1 to i32
    %c0_i32_24 = arith.constant 0 : i32
    %31 = arith.cmpi ne, %30, %c0_i32_24 : i32
    scf.if %31 {
      %c0_25 = arith.constant 0 : index
      %c0_26 = arith.constant 0 : index
      %c0_27 = arith.constant 0 : index
      %32 = vector.load %arg6[%c0_25, %c0_26, %c0_27] : memref<1x16x1xf32, #tpu.memory_space<vmem>>, vector<1x16x1xf32>
      %cst_28 = arith.constant 0.010416667 : f32
      %33 = vector.broadcast %cst_28 : f32 to vector<1x16x1xf32>
      %34 = arith.mulf %32, %33 : vector<1x16x1xf32>
      %c0_29 = arith.constant 0 : index
      %c0_30 = arith.constant 0 : index
      %c0_31 = arith.constant 0 : index
      %35 = vector.load %arg5[%c0_29, %c0_30, %c0_31] : memref<1x16x1xf32, #tpu.memory_space<vmem>>, vector<1x16x1xf32>
      %36 = arith.addf %35, %34 : vector<1x16x1xf32>
      %c0_32 = arith.constant 0 : index
      %c0_33 = arith.constant 0 : index
      %c0_34 = arith.constant 0 : index
      %37 = vector.load %arg3[%c0_32, %c0_33, %c0_34] : memref<1x16x1xf32, #tpu.memory_space<vmem>>, vector<1x16x1xf32>
      tpu.vector_store %arg3[%c0_32, %c0_33, %c0_34], %36 {strides = array<i32>} : memref<1x16x1xf32, #tpu.memory_space<vmem>>, vector<1x16x1xf32>,
      %c0_35 = arith.constant 0 : index
      %c0_36 = arith.constant 0 : index
      %c0_37 = arith.constant 0 : index
      %38 = vector.load %arg7[%c0_35, %c0_36, %c0_37] : memref<1x16x1xf32, #tpu.memory_space<vmem>>, vector<1x16x1xf32>
      %cst_38 = arith.constant 0.010416667 : f32
      %39 = vector.broadcast %cst_38 : f32 to vector<1x16x1xf32>
      %40 = arith.mulf %38, %39 : vector<1x16x1xf32>
      %41 = arith.mulf %34, %34 : vector<1x16x1xf32>
      %42 = arith.subf %40, %41 : vector<1x16x1xf32>
      %cst_39 = arith.constant 0.000000e+00 : f32
      %43 = vector.broadcast %cst_39 : f32 to vector<1x16x1xf32>
      %44 = arith.maximumf %42, %43 : vector<1x16x1xf32>
      %c0_40 = arith.constant 0 : index
      %c0_41 = arith.constant 0 : index
      %c0_42 = arith.constant 0 : index
      %45 = vector.load %arg4[%c0_40, %c0_41, %c0_42] : memref<1x16x1xf32, #tpu.memory_space<vmem>>, vector<1x16x1xf32>
      tpu.vector_store %arg4[%c0_40, %c0_41, %c0_42], %44 {strides = array<i32>} : memref<1x16x1xf32, #tpu.memory_space<vmem>>, vector<1x16x1xf32>,
    } else {
    }
    return
  }
  func.func @transform_0(%arg0: i32, %arg1: i32) -> (i32, i32, i32) {
    %c0_i32 = arith.constant 0 : i32
    %c0_i32_0 = arith.constant 0 : i32
    return %arg0, %c0_i32, %arg1 : i32, i32, i32
  }
  func.func @transform_1(%arg0: i32, %arg1: i32) -> (i32, i32, i32) {
    %c0_i32 = arith.constant 0 : i32
    %c0_i32_0 = arith.constant 0 : i32
    %c0_i32_1 = arith.constant 0 : i32
    %c0_i32_2 = arith.constant 0 : i32
    return %c0_i32, %c0_i32_0, %c0_i32_1 : i32, i32, i32
  }
  func.func @transform_2(%arg0: i32, %arg1: i32) -> (i32, i32, i32) {
    %c0_i32 = arith.constant 0 : i32
    %c0_i32_0 = arith.constant 0 : i32
    %c0_i32_1 = arith.constant 0 : i32
    %c0_i32_2 = arith.constant 0 : i32
    return %c0_i32, %c0_i32_0, %c0_i32_1 : i32, i32, i32
  }
}

module attributes {stable_mosaic.version = 11 : i64} {
  func.func @_film_affine_kernel(%arg0: i32, %arg1: i32, %arg2: memref<2x16x48xf32, #tpu.memory_space<vmem>>, %arg3: memref<2x16x1xf32, #tpu.memory_space<vmem>>, %arg4: memref<2x16x1xf32, #tpu.memory_space<vmem>>, %arg5: memref<2x16x48xf32, #tpu.memory_space<vmem>>) attributes {dimension_semantics = [#tpu.dimension_semantics<parallel>, #tpu.dimension_semantics<parallel>], iteration_bounds = array<i64: 1, 1>, scalar_prefetch = 0 : i64, scratch_operands = 0 : i64, tpu.core_type = #tpu.core_type<tc>, window_params = [{transform_indices = @transform_0, window_bounds = array<i64: 2, 16, 48>}, {transform_indices = @transform_1, window_bounds = array<i64: 2, 16, 1>}, {transform_indices = @transform_2, window_bounds = array<i64: 2, 16, 1>}, {transform_indices = @transform_3, window_bounds = array<i64: 2, 16, 48>}]} {
    %c0 = arith.constant 0 : index
    %c0_0 = arith.constant 0 : index
    %c0_1 = arith.constant 0 : index
    %0 = vector.load %arg2[%c0, %c0_0, %c0_1] : memref<2x16x48xf32, #tpu.memory_space<vmem>>, vector<2x16x48xf32>
    %c0_2 = arith.constant 0 : index
    %c0_3 = arith.constant 0 : index
    %c0_4 = arith.constant 0 : index
    %1 = vector.load %arg3[%c0_2, %c0_3, %c0_4] : memref<2x16x1xf32, #tpu.memory_space<vmem>>, vector<2x16x1xf32>
    %2 = vector.broadcast %1 : vector<2x16x1xf32> to vector<2x16x48xf32>
    %3 = arith.mulf %0, %2 : vector<2x16x48xf32>
    %c0_5 = arith.constant 0 : index
    %c0_6 = arith.constant 0 : index
    %c0_7 = arith.constant 0 : index
    %4 = vector.load %arg4[%c0_5, %c0_6, %c0_7] : memref<2x16x1xf32, #tpu.memory_space<vmem>>, vector<2x16x1xf32>
    %5 = vector.broadcast %4 : vector<2x16x1xf32> to vector<2x16x48xf32>
    %6 = arith.addf %3, %5 : vector<2x16x48xf32>
    %c0_8 = arith.constant 0 : index
    %c0_9 = arith.constant 0 : index
    %c0_10 = arith.constant 0 : index
    %7 = vector.load %arg5[%c0_8, %c0_9, %c0_10] : memref<2x16x48xf32, #tpu.memory_space<vmem>>, vector<2x16x48xf32>
    tpu.vector_store %arg5[%c0_8, %c0_9, %c0_10], %6 {strides = array<i32>} : memref<2x16x48xf32, #tpu.memory_space<vmem>>, vector<2x16x48xf32>,
    return
  }
  func.func @transform_0(%arg0: i32, %arg1: i32) -> (i32, i32, i32) {
    %c0_i32 = arith.constant 0 : i32
    %c0_i32_0 = arith.constant 0 : i32
    return %arg0, %c0_i32, %arg1 : i32, i32, i32
  }
  func.func @transform_1(%arg0: i32, %arg1: i32) -> (i32, i32, i32) {
    %c0_i32 = arith.constant 0 : i32
    %c0_i32_0 = arith.constant 0 : i32
    %c0_i32_1 = arith.constant 0 : i32
    return %arg0, %c0_i32, %c0_i32_0 : i32, i32, i32
  }
  func.func @transform_2(%arg0: i32, %arg1: i32) -> (i32, i32, i32) {
    %c0_i32 = arith.constant 0 : i32
    %c0_i32_0 = arith.constant 0 : i32
    %c0_i32_1 = arith.constant 0 : i32
    return %arg0, %c0_i32, %c0_i32_0 : i32, i32, i32
  }
  func.func @transform_3(%arg0: i32, %arg1: i32) -> (i32, i32, i32) {
    %c0_i32 = arith.constant 0 : i32
    %c0_i32_0 = arith.constant 0 : i32
    return %arg0, %c0_i32, %arg1 : i32, i32, i32
  }
}

</mosaic_0001>

<llo_original>
// kernel: film_forward.2
$region0: #{film_forward.2}
  #allocation0 [shape = 'u32[]', space=smem, size = 0x4, offset = 0x4, fixed_abs, tag = 'smem constant byte address 0x4 - core index']
  #allocation1 [shape = 'u32[144,128]{1,0:T(1,128)}', space=vmem, size = 0x12000, scoped, tag = 'internal scratch']
  #allocation2 [shape = 'f32[1,16,1]{2,1,0:T(8,128)}', space=vmem, size = 0x2000, scoped, tag = 'scratch operand']
  #allocation3 [shape = 'f32[1,16,1]{2,1,0:T(8,128)}', space=vmem, size = 0x2000, scoped, tag = 'scratch operand']
  #allocation4 [shape = 'f32[1,16,1]{2,1,0:T(8,128)}', space=vmem, size = 0x2000, scoped, tag = 'scratch operand']
  %s0 = inlined_call_operand.vmem [shape: f32[2,16,48], index: 0, kind: input, shape index: {}]
  %s1 = inlined_call_operand.vmem [shape: f32[1,16,1], index: 1, kind: output, shape index: {0}]
  %s2 = inlined_call_operand.vmem [shape: f32[1,16,1], index: 2, kind: output, shape index: {1}]
  %3 = xla_tuple %s1, %s2
  %s4 = sld [smem:[#allocation0]]
  $region30: #{film_forward.2} parent=0
    _
  %s6 = ssub.s32 1, %s4
  %s7 = scalar_select 0, %s6, %s4
  // Predicated region
  $region2: #{film_forward.2} parent=0 // pred_check
    _
  $region3: #{film_forward.2} parent=0 // pred_check_branch
    %9 = sbr.rel (0) target = $region5
  $region4: #{film_forward.2} parent=0 // pred_region
    _
  $region5: #{film_forward.2} parent=0 // pred_fallthru
    _
  %v10 = vld [vmem:[%s0] sm:$0xff]
  %v11 = vld [vmem:[%s0 + $0x8] sm:$0xff]
  %v12 = vld [vmem:[%s0 + $0x10] sm:$0xff]
  %v13 = vld [vmem:[%s0 + $0x18] sm:$0xff]
  %v14 = vlaneseq
  %v15 = vand.u32 %v14, 127
  %s16 = smul.u32 0, 48
  %s17 = ssub.s32 48, %s16
  %v18 = vstv %s17
  %vm19 = vcmp.lt.s32.totalorder %v15, %v18
  %p20 = scmp.eq.s32.totalorder 0, 0
  %p21 = scmp.eq.s32.totalorder 0, 0
  %p22 = pnand %p20, %p21
  %p23 = pneg %p22
  // Predicated region
  $region6: #{film_forward.2} parent=0 // pred_check
    _
  $region7: #{film_forward.2} parent=0 // pred_check_branch
    %25 = sbr.rel (%p22) target = $region9
  $region8: #{film_forward.2} parent=0 // pred_region
    %v26 = vsel %vm19, %v10, 0.0
    %v27 = vsel %vm19, %v11, 0.0
    %v28 = vsel %vm19, %v12, 0.0
    %v29 = vsel %vm19, %v13, 0.0
    %vm30 = vcmask 392192
    %v31 = vsel %vm30, %v26, 0.0
    %v32 = vsel %vm30, %v28, 0.0
    %v33 = vadd.f32 %v31, %v32
    %34 = vadd.xlane.f32.xlu0 %v33
    %v35 = vpop.xlane.xlu0 %34
    %v36 = vsel %vm30, %v27, 0.0
    %v37 = vsel %vm30, %v29, 0.0
    %v38 = vadd.f32 %v36, %v37
    %39 = vadd.xlane.f32.xlu0 %v38
    %v40 = vpop.xlane.xlu0 %39
    %v41 = vmul.f32 %v35, 0.010416667
    %v42 = vmul.f32 %v40, 0.010416667
    %vm43 = vcmask 7168
    %44 = vst.msk [vmem:[#allocation2] sm:$0xff] %vm43, %v41
    %45 = vst.msk [vmem:[#allocation2 + $0x8] sm:$0xff] %vm43, %v42
    %46 = vst.msk [vmem:[#allocation3] sm:$0xff] %vm43, 0.0
    %47 = vst.msk [vmem:[#allocation3 + $0x8] sm:$0xff] %vm43, 0.0
    %48 = vst.msk [vmem:[#allocation4] sm:$0xff] %vm43, 0.0
    %49 = vst.msk [vmem:[#allocation4 + $0x8] sm:$0xff] %vm43, 0.0
  $region9: #{film_forward.2} parent=0 // pred_fallthru
    _
  %v50 = vld [vmem:[#allocation2] sm:$0xff]
  %v51 = vld [vmem:[#allocation2 + $0x8] sm:$0xff]
  %53 = vset.pattern.permute.xlu0 0
  %54 = vperm.xlu0 %53, %v50
  %v55 = vpop.permute.xlu0 %54
  %58 = vset.pattern.permute.xlu0 0
  %59 = vperm.xlu0 %58, %v51
  %v60 = vpop.permute.xlu0 %59
  %v62 = vsub.f32 %v10, %v55
  %v63 = vsub.f32 %v11, %v60
  %v64 = vsub.f32 %v12, %v55
  %v65 = vsub.f32 %v13, %v60
  %v66 = vsel %vm19, %v62, 0.0
  %v67 = vsel %vm19, %v63, 0.0
  %v68 = vsel %vm19, %v64, 0.0
  %v69 = vsel %vm19, %v65, 0.0
  %v70 = vld [vmem:[#allocation3] sm:$0xff]
  %v71 = vld [vmem:[#allocation3 + $0x8] sm:$0xff]
  %vm72 = vcmask 392192
  %v73 = vsel %vm72, %v66, 0.0
  %v74 = vsel %vm72, %v68, 0.0
  %v75 = vadd.f32 %v73, %v74
  %76 = vadd.xlane.f32.xlu0 %v75
  %v77 = vpop.xlane.xlu0 %76
  %v78 = vsel %vm72, %v67, 0.0
  %v79 = vsel %vm72, %v69, 0.0
  %v80 = vadd.f32 %v78, %v79
  %81 = vadd.xlane.f32.xlu0 %v80
  %v82 = vpop.xlane.xlu0 %81
  %v83 = vadd.f32 %v70, %v77
  %v84 = vadd.f32 %v71, %v82
  %vm85 = vcmask 7168
  %86 = vst.msk [vmem:[#allocation3] sm:$0xff] %vm85, %v83
  %87 = vst.msk [vmem:[#allocation3 + $0x8] sm:$0xff] %vm85, %v84
  %v88 = vld [vmem:[#allocation4] sm:$0xff]
  %v89 = vld [vmem:[#allocation4 + $0x8] sm:$0xff]
  %v90 = vmul.f32 %v66, %v66
  %v91 = vmul.f32 %v67, %v67
  %v92 = vmul.f32 %v68, %v68
  %v93 = vmul.f32 %v69, %v69
  %v94 = vsel %vm72, %v90, 0.0
  %v95 = vsel %vm72, %v92, 0.0
  %v96 = vadd.f32 %v94, %v95
  %97 = vadd.xlane.f32.xlu0 %v96
  %v98 = vpop.xlane.xlu0 %97
  %v99 = vsel %vm72, %v91, 0.0
  %v100 = vsel %vm72, %v93, 0.0
  %v101 = vadd.f32 %v99, %v100
  %102 = vadd.xlane.f32.xlu0 %v101
  %v103 = vpop.xlane.xlu0 %102
  %v104 = vadd.f32 %v88, %v98
  %v105 = vadd.f32 %v89, %v103
  %106 = vst.msk [vmem:[#allocation4] sm:$0xff] %vm85, %v104
  %107 = vst.msk [vmem:[#allocation4 + $0x8] sm:$0xff] %vm85, %v105
  // Predicated region
  $region10: #{film_forward.2} parent=0 // pred_check
    _
  $region11: #{film_forward.2} parent=0 // pred_check_branch
    %109 = sbr.rel (%p22) target = $region13
  $region12: #{film_forward.2} parent=0 // pred_region
    %v110 = vld [vmem:[#allocation3] sm:$0xff]
    %v111 = vld [vmem:[#allocation3 + $0x8] sm:$0xff]
    %v112 = vmul.f32 %v110, 0.010416667
    %v113 = vmul.f32 %v111, 0.010416667
    %v114 = vld [vmem:[#allocation2] sm:$0xff]
    %v115 = vld [vmem:[#allocation2 + $0x8] sm:$0xff]
    %v116 = vadd.f32 %v114, %v112
    %v117 = vadd.f32 %v115, %v113
    %118 = vst.msk [vmem:[%s1] sm:$0xff] %vm85, %v116
    %119 = vst.msk [vmem:[%s1 + $0x8] sm:$0xff] %vm85, %v117
    %v120 = vld [vmem:[#allocation4] sm:$0xff]
    %v121 = vld [vmem:[#allocation4 + $0x8] sm:$0xff]
    %v122 = vmul.f32 %v120, 0.010416667
    %v123 = vmul.f32 %v121, 0.010416667
    %v124 = vmul.f32 %v112, %v112
    %v125 = vmul.f32 %v113, %v113
    %v126 = vsub.f32 %v122, %v124
    %v127 = vsub.f32 %v123, %v125
    %v128 = vmax.f32 %v126, 0.0
    %v129 = vmax.f32 %v127, 0.0
    %130 = vst.msk [vmem:[%s2] sm:$0xff] %vm85, %v128
    %131 = vst.msk [vmem:[%s2 + $0x8] sm:$0xff] %vm85, %v129
  $region13: #{film_forward.2} parent=0 // pred_fallthru
    _
  // Predicated region
  $region14: #{film_forward.2} parent=0 // pred_check
    _
  $region15: #{film_forward.2} parent=0 // pred_check_branch
    %133 = sbr.rel (0) target = $region17
  $region16: #{film_forward.2} parent=0 // pred_region
    _
  $region17: #{film_forward.2} parent=0 // pred_fallthru
    _
  // Predicated region
  $region18: #{film_forward.2} parent=0 // pred_check
    _
  $region19: #{film_forward.2} parent=0 // pred_check_branch
    %135 = sbr.rel (0) target = $region21
  $region20: #{film_forward.2} parent=0 // pred_region
    _
  $region21: #{film_forward.2} parent=0 // pred_fallthru
    _
  // Predicated region
  $region22: #{film_forward.2} parent=0 // pred_check
    _
  $region23: #{film_forward.2} parent=0 // pred_check_branch
    %137 = sbr.rel (0) target = $region25
  $region24: #{film_forward.2} parent=0 // pred_region
    _
  $region25: #{film_forward.2} parent=0 // pred_fallthru
    _
  // Predicated region
  $region26: #{film_forward.2} parent=0 // pred_check
    _
  $region27: #{film_forward.2} parent=0 // pred_check_branch
    %139 = sbr.rel (0) target = $region29
  $region28: #{film_forward.2} parent=0 // pred_region
    _
  $region29: #{film_forward.2} parent=0 // pred_fallthru
    _

// kernel: film_forward.3
$region0: #{film_forward.3}
  #allocation0 [shape = 'u32[]', space=smem, size = 0x4, offset = 0x4, fixed_abs, tag = 'smem constant byte address 0x4 - core index']
  #allocation1 [shape = 'u32[144,128]{1,0:T(1,128)}', space=vmem, size = 0x12000, scoped, tag = 'internal scratch']
  %s0 = inlined_call_operand.vmem [shape: f32[2,16,48], index: 0, kind: input, shape index: {}]
  %s1 = inlined_call_operand.vmem [shape: f32[2,16,1], index: 1, kind: input, shape index: {}]
  %s2 = inlined_call_operand.vmem [shape: f32[2,16,1], index: 2, kind: input, shape index: {}]
  %s3 = inlined_call_operand.hbm [shape: f32[2,16,48], index: 3, kind: output, shape index: {}]
  %s4 = sld [smem:[#allocation0]]
  $region22: #{film_forward.3} parent=0
    _
  %s6 = ssub.s32 1, %s4
  %s7 = scalar_select 0, %s6, %s4
  $region1: #{film_forward.3} parent=0
    #allocation2 [shape = 'u8[16384]{0}', space=vmem, size = 0x4000, scoped, tag = 'output window, operand 0, single buffered']
    #allocation3 [shape = 's32[1]{0}', space=sflag, size = 0x4, scoped, tag = 'scoped memory for film_forward.3']
    %8 = vsyncpa [#allocation3], 0
    // Predicated region
    $region2: #{film_forward.3} parent=1 // pred_check
      _
    $region3: #{film_forward.3} parent=1 // pred_check_branch
      %10 = sbr.rel (0) target = $region5
    $region4: #{film_forward.3} parent=1 // pred_region
      _
    $region5: #{film_forward.3} parent=1 // pred_fallthru
      _
    // Predicated region
    $region6: #{film_forward.3} parent=1 // pred_check
      _
    $region7: #{film_forward.3} parent=1 // pred_check_branch
      %12 = sbr.rel (0) target = $region9
    $region8: #{film_forward.3} parent=1 // pred_region
      _
    $region9: #{film_forward.3} parent=1 // pred_fallthru
      _
    // Predicated region
    $region10: #{film_forward.3} parent=1 // pred_check
      _
    $region11: #{film_forward.3} parent=1 // pred_check_branch
      %14 = sbr.rel (0) target = $region13
    $region12: #{film_forward.3} parent=1 // pred_region
      _
    $region13: #{film_forward.3} parent=1 // pred_fallthru
      _
    %v15 = vld [vmem:[%s0] sm:$0xff]
    %v16 = vld [vmem:[%s0 + $0x8] sm:$0xff]
    %v17 = vld [vmem:[%s0 + $0x10] sm:$0xff]
    %v18 = vld [vmem:[%s0 + $0x18] sm:$0xff]
    %v19 = vld [vmem:[%s1] sm:$0xff]
    %v20 = vld [vmem:[%s1 + $0x8] sm:$0xff]
    %v21 = vld [vmem:[%s1 + $0x10] sm:$0xff]
    %v22 = vld [vmem:[%s1 + $0x18] sm:$0xff]
    %24 = vset.pattern.permute.xlu0 0
    %25 = vperm.xlu0 %24, %v19
    %v26 = vpop.permute.xlu0 %25
    %29 = vset.pattern.permute.xlu0 0
    %30 = vperm.xlu0 %29, %v20
    %v31 = vpop.permute.xlu0 %30
    %34 = vset.pattern.permute.xlu0 0
    %35 = vperm.xlu0 %34, %v21
    %v36 = vpop.permute.xlu0 %35
    %39 = vset.pattern.permute.xlu0 0
    %40 = vperm.xlu0 %39, %v22
    %v41 = vpop.permute.xlu0 %40
    %v43 = vmul.f32 %v15, %v26
    %v44 = vmul.f32 %v16, %v31
    %v45 = vmul.f32 %v17, %v36
    %v46 = vmul.f32 %v18, %v41
    %v47 = vld [vmem:[%s2] sm:$0xff]
    %v48 = vld [vmem:[%s2 + $0x8] sm:$0xff]
    %v49 = vld [vmem:[%s2 + $0x10] sm:$0xff]
    %v50 = vld [vmem:[%s2 + $0x18] sm:$0xff]
    %52 = vset.pattern.permute.xlu0 0
    %53 = vperm.xlu0 %52, %v47
    %v54 = vpop.permute.xlu0 %53
    %57 = vset.pattern.permute.xlu0 0
    %58 = vperm.xlu0 %57, %v48
    %v59 = vpop.permute.xlu0 %58
    %62 = vset.pattern.permute.xlu0 0
    %63 = vperm.xlu0 %62, %v49
    %v64 = vpop.permute.xlu0 %63
    %67 = vset.pattern.permute.xlu0 0
    %68 = vperm.xlu0 %67, %v50
    %v69 = vpop.permute.xlu0 %68
    %v71 = vadd.f32 %v43, %v54
    %v72 = vadd.f32 %v44, %v59
    %v73 = vadd.f32 %v45, %v64
    %v74 = vadd.f32 %v46, %v69
    %vm75 = vcmask 392192
    %76 = vst.msk [vmem:[#allocation2] sm:$0xff] %vm75, %v71
    %77 = vst.msk [vmem:[#allocation2 + $0x8] sm:$0xff] %vm75, %v72
    %78 = vst.msk [vmem:[#allocation2 + $0x10] sm:$0xff] %vm75, %v73
    %79 = vst.msk [vmem:[#allocation2 + $0x18] sm:$0xff] %vm75, %v74
    // Predicated region
    $region14: #{film_forward.3} parent=1 // pred_check
      _
    $region15: #{film_forward.3} parent=1 // pred_check_branch
      %81 = sbr.rel (0) target = $region17
    $region16: #{film_forward.3} parent=1 // pred_region
      %s83 = ssub.s32 512, 512
      %84 = vsyncadd [#allocation3], %s83
      %s85 = sshll.u32 [#allocation2], 4
      %s86 = int_to_ptr.vmem [resolvable:$true] %s85
      %91 = dma.vmem_to_hbm [thread:$0]  %s86, 512, %s3, [#allocation3], 128, 128, 8
    $region17: #{film_forward.3} parent=1 // pred_fallthru
      _
    // Predicated region
    $region18: #{film_forward.3} parent=1 // pred_check
      _
    $region19: #{film_forward.3} parent=1 // pred_check_branch
      %93 = sbr.rel (0) target = $region21
    $region20: #{film_forward.3} parent=1 // pred_region
      %94 = dma.done [#allocation3], 512
    $region21: #{film_forward.3} parent=1 // pred_fallthru
      _
    %95 = vsyncpa [#allocation3], 1

</llo_original>
